<compile_context>
chip_gen: v7x
topology: tpu7x:2x2x1
jax: 0.10.0
libtpu: 0.0.40
codegen_flags: <defaults>
</compile_context>

<pallas_src>
import functools

import jax
import jax.numpy as jnp
from jax import lax
from jax.experimental import pallas as pl
from jax.experimental.pallas import tpu as pltpu


D_MODEL = 128     # small, lane-aligned stand-in for the default 1024
MAX_POS = 50      # nn.Embedding(50, d_model)

# Safe scoped-VMEM request across generations (v7x physical is 64 MiB);
# our blocks are sized so double-buffered in+out streams stay well under it.
_VMEM_LIMIT_BYTES = 32 * 1024 * 1024


def _round_up(x, m):
    return ((x + m - 1) // m) * m


def _choose_tile_rows(rows, d, itemsize):
    """Largest row tile that keeps blocks ~4 MiB and rows a multiple of 8."""
    if rows <= 1024:
        return _round_up(rows, 8)
    max_rows_by_bytes = (4 * 1024 * 1024) // max(1, d * itemsize)
    tile = min(1024, max(8, max_rows_by_bytes))
    return max(8, (tile // 8) * 8)


# --------------------------------------------------------------------------
# Elementwise robust-scaler kernels (normalize / denormalize)
# --------------------------------------------------------------------------
def _affine_kernel(x_ref, p_ref, o_ref, *, mode):
    x = x_ref[...]            # (tile_rows, D)
    med = p_ref[0:1, :]       # (1, D) broadcast over rows
    s = p_ref[1:2, :]         # (1, D): inv_scale (normalize) or scale (denorm)
    if mode == "normalize":
        o_ref[...] = (x - med) * s        # multiply by precomputed 1/scale
    else:  # denormalize
        o_ref[...] = x * s + med


def _affine(x2d, row0, row1, mode):
    R, D = x2d.shape
    tile_rows = _choose_tile_rows(R, D, x2d.dtype.itemsize)
    Rp = _round_up(R, tile_rows)
    if Rp != R:
        x2d = jnp.pad(x2d, ((0, Rp - R), (0, 0)))
    params = jnp.stack([row0, row1]).astype(x2d.dtype)   # (2, D)
    kernel = functools.partial(_affine_kernel, mode=mode)
    out = pl.pallas_call(
        kernel,
        out_shape=jax.ShapeDtypeStruct((Rp, D), x2d.dtype),
        grid_spec=pltpu.PrefetchScalarGridSpec(
            num_scalar_prefetch=0,
            grid=(Rp // tile_rows,),
            in_specs=[
                pl.BlockSpec((tile_rows, D), lambda i: (i, 0)),
                pl.BlockSpec((2, D), lambda i: (0, 0)),
            ],
            out_specs=pl.BlockSpec((tile_rows, D), lambda i: (i, 0)),
        ),
        compiler_params=pltpu.CompilerParams(
            dimension_semantics=("parallel",),
            vmem_limit_bytes=_VMEM_LIMIT_BYTES),
    )(x2d, params)
    return out[:R]


def normalize(x, median, scale):
    """(x - median) / scale ; x: (B, S, D), median/scale: (D,)."""
    B, S, D = x.shape
    inv_scale = 1.0 / scale   # exact reciprocal of only D elements (cheap)
    out = _affine(x.reshape(B * S, D), median, inv_scale, "normalize")
    return out.reshape(B, S, D)


def denormalize(x, median, scale):
    """x * scale + median ; x: (B, S, D), median/scale: (D,)."""
    B, S, D = x.shape
    out = _affine(x.reshape(B * S, D), median, scale, "denormalize")
    return out.reshape(B, S, D)


# --------------------------------------------------------------------------
# Positional embedding gather as a one-hot MXU matmul
# --------------------------------------------------------------------------
def _embed_kernel(pos_ref, table_ref, o_ref):
    # pos_ref: (tile_n, 1) int32   table_ref: (MAX_POS, D)   o_ref: (tile_n, D)
    pos = pos_ref[...]
    n = pos.shape[0]
    onehot = (lax.broadcasted_iota(jnp.int32, (n, MAX_POS), 1) == pos
              ).astype(table_ref.dtype)
    o_ref[...] = jnp.dot(onehot, table_ref[...],
                         preferred_element_type=jnp.float32
                         ).astype(o_ref.dtype)


def pos_encoder(positions, table):
    """Embedding gather. positions: (B, S) int, table: (MAX_POS, D)."""
    B, S = positions.shape
    N = B * S
    D = table.shape[1]
    tile_n = min(256, _round_up(N, 8))
    Np = _round_up(N, tile_n)
    # Clamp: TPU VMEM has no runtime OOB check; keep indices in range.
    flat = jnp.clip(positions.reshape(N).astype(jnp.int32), 0, MAX_POS - 1)
    flat = jnp.pad(flat, (0, Np - N)).reshape(Np, 1)
    out = pl.pallas_call(
        _embed_kernel,
        out_shape=jax.ShapeDtypeStruct((Np, D), table.dtype),
        grid_spec=pltpu.PrefetchScalarGridSpec(
            num_scalar_prefetch=0,
            grid=(Np // tile_n,),
            in_specs=[
                pl.BlockSpec((tile_n, 1), lambda i: (i, 0)),
                pl.BlockSpec((MAX_POS, D), lambda i: (0, 0)),
            ],
            out_specs=pl.BlockSpec((tile_n, D), lambda i: (i, 0)),
        ),
        compiler_params=pltpu.CompilerParams(
            dimension_semantics=("parallel",),
            vmem_limit_bytes=_VMEM_LIMIT_BYTES),
    )(flat, table)
    return out[:N].reshape(B, S, D)


# --------------------------------------------------------------------------
# Main
# --------------------------------------------------------------------------
if __name__ == "__main__":
    key = jax.random.PRNGKey(0)
    k_x, k_tbl, k_med, k_sc, k_big = jax.random.split(key, 5)

    B, S, D = 2, 8, D_MODEL
    src = jax.random.normal(k_x, (B, S, D), dtype=jnp.float32)

    # Deterministic synthetic parameters (shapes from __init__).
    pos_table = 0.02 * jax.random.normal(k_tbl, (MAX_POS, D), dtype=jnp.float32)
    median = jax.random.normal(k_med, (D,), dtype=jnp.float32)       # scaler.center_
    scale = 0.5 + jax.random.uniform(k_sc, (D,), dtype=jnp.float32)  # scaler.scale_ > 0

    positions = (jnp.arange(B * S, dtype=jnp.int32) % MAX_POS).reshape(B, S)

    # Run kernels.
    x_norm = normalize(src, median, scale)
    x_denorm = denormalize(x_norm, median, scale)
    pos_emb = pos_encoder(positions, pos_table)

    jax.block_until_ready((x_norm, x_denorm, pos_emb))

    # Reference checks (pure JAX).
    ref_norm = (src - median) / scale
    ref_denorm = ref_norm * scale + median
    ref_emb = pos_table[positions.reshape(-1)].reshape(B, S, D)

    assert jnp.allclose(x_norm, ref_norm, atol=1e-5, rtol=1e-5)
    assert jnp.allclose(x_denorm, ref_denorm, atol=1e-5, rtol=1e-5)
    assert jnp.allclose(x_denorm, src, atol=1e-4, rtol=1e-4)  # round-trip
    assert jnp.allclose(pos_emb, ref_emb, atol=1e-6, rtol=1e-6)

    # Extra check: row count that is neither a tile multiple nor < one tile,
    # to exercise the multi-block grid + padded last tile path.
    big = jax.random.normal(k_big, (3, 700, D), dtype=jnp.float32)   # 2100 rows
    big_norm = normalize(big, median, scale)
    jax.block_until_ready(big_norm)
    assert jnp.allclose(big_norm, (big - median) / scale, atol=1e-5, rtol=1e-5)

    print("KERNEL_OK")
</pallas_src>

<mosaic_0001>
module attributes {stable_mosaic.version = 11 : i64} {
  func.func @_affine_kernel(%arg0: i32, %arg1: memref<16x128xf32, #tpu.memory_space<vmem>>, %arg2: memref<2x128xf32, #tpu.memory_space<vmem>>, %arg3: memref<16x128xf32, #tpu.memory_space<vmem>>) attributes {dimension_semantics = [#tpu.dimension_semantics<parallel>], iteration_bounds = array<i64: 1>, scalar_prefetch = 0 : i64, scratch_operands = 0 : i64, tpu.core_type = #tpu.core_type<tc>, window_params = [{transform_indices = @transform_0, window_bounds = array<i64: 16, 128>}, {pipeline_mode = #tpu.pipeline_mode<synchronous>, transform_indices = @transform_1, window_bounds = array<i64: 2, 128>}, {transform_indices = @transform_2, window_bounds = array<i64: 16, 128>}]} {
    %c0 = arith.constant 0 : index
    %c0_0 = arith.constant 0 : index
    %0 = vector.load %arg1[%c0, %c0_0] : memref<16x128xf32, #tpu.memory_space<vmem>>, vector<16x128xf32>
    %c0_1 = arith.constant 0 : index
    %c0_2 = arith.constant 0 : index
    %1 = vector.load %arg2[%c0_1, %c0_2] : memref<2x128xf32, #tpu.memory_space<vmem>>, vector<1x128xf32>
    %c1 = arith.constant 1 : index
    %c0_3 = arith.constant 0 : index
    %2 = vector.load %arg2[%c1, %c0_3] : memref<2x128xf32, #tpu.memory_space<vmem>>, vector<1x128xf32>
    %3 = vector.broadcast %1 : vector<1x128xf32> to vector<16x128xf32>
    %4 = arith.subf %0, %3 : vector<16x128xf32>
    %5 = vector.broadcast %2 : vector<1x128xf32> to vector<16x128xf32>
    %6 = arith.mulf %4, %5 : vector<16x128xf32>
    %c0_4 = arith.constant 0 : index
    %c0_5 = arith.constant 0 : index
    %7 = vector.load %arg3[%c0_4, %c0_5] : memref<16x128xf32, #tpu.memory_space<vmem>>, vector<16x128xf32>
    tpu.vector_store %arg3[%c0_4, %c0_5], %6 {strides = array<i32>} : memref<16x128xf32, #tpu.memory_space<vmem>>, vector<16x128xf32>,
    return
  }
  func.func @transform_0(%arg0: i32) -> (i32, i32) {
    %c0_i32 = arith.constant 0 : i32
    %c0_i32_0 = arith.constant 0 : i32
    return %arg0, %c0_i32 : i32, i32
  }
  func.func @transform_1(%arg0: i32) -> (i32, i32) {
    %c0_i32 = arith.constant 0 : i32
    %c0_i32_0 = arith.constant 0 : i32
    %c0_i32_1 = arith.constant 0 : i32
    return %c0_i32, %c0_i32_0 : i32, i32
  }
  func.func @transform_2(%arg0: i32) -> (i32, i32) {
    %c0_i32 = arith.constant 0 : i32
    %c0_i32_0 = arith.constant 0 : i32
    return %arg0, %c0_i32 : i32, i32
  }
}

</mosaic_0001>

<llo_original>
// kernel: tpu_custom_call.1
$region0: #{tpu_custom_call.1}
  #allocation0 [shape = 'u32[]', space=smem, size = 0x4, offset = 0x4, fixed_abs, tag = 'smem constant byte address 0x4 - core index']
  #allocation1 [shape = 'u32[144,128]{1,0:T(1,128)}', space=vmem, size = 0x12000, scoped, tag = 'internal scratch']
  %s0 = inlined_call_operand.hbm [shape: f32[16,128], index: 0, kind: input, shape index: {}]
  %s1 = inlined_call_operand.vmem [shape: f32[2,128], index: 1, kind: input, shape index: {}]
  %s2 = inlined_call_operand.hbm [shape: f32[16,128], index: 2, kind: output, shape index: {}]
  %s3 = sld [smem:[#allocation0]]
  $region22: #{tpu_custom_call.1} parent=0
    _
  %s5 = ssub.s32 1, %s3
  %s6 = scalar_select 0, %s5, %s3
  $region1: #{tpu_custom_call.1} parent=0
    #allocation2 [shape = 'u8[8192]{0}', space=vmem, size = 0x2000, scoped, tag = 'input window, operand 0, single buffered']
    #allocation3 [shape = 's32[1]{0}', space=sflag, size = 0x4, scoped, tag = 'scoped memory for tpu_custom_call.1']
    #allocation4 [shape = 's32[1]{0}', space=sflag, size = 0x4, scoped, tag = 'scoped memory for tpu_custom_call.1']
    #allocation5 [shape = 'u8[8192]{0}', space=vmem, size = 0x2000, scoped, tag = 'output window, operand 0, single buffered']
    %7 = vsyncpa [#allocation3], 0
    %8 = vsyncpa [#allocation4], 0
    // Predicated region
    $region2: #{tpu_custom_call.1} parent=1 // pred_check
      _
    $region3: #{tpu_custom_call.1} parent=1 // pred_check_branch
      %10 = sbr.rel (0) target = $region5
    $region4: #{tpu_custom_call.1} parent=1 // pred_region
      %s12 = ssub.s32 256, 256
      %13 = vsyncadd [#allocation3], %s12
      %s14 = sshll.u32 [#allocation2], 4
      %s15 = int_to_ptr.vmem [resolvable:$true] %s14
      %20 = dma.hbm_to_vmem [thread:$0]  %s0, 256, %s15, [#allocation3], 128, 128, 8
    $region5: #{tpu_custom_call.1} parent=1 // pred_fallthru
      _
    // Predicated region
    $region6: #{tpu_custom_call.1} parent=1 // pred_check
      _
    $region7: #{tpu_custom_call.1} parent=1 // pred_check_branch
      %22 = sbr.rel (0) target = $region9
    $region8: #{tpu_custom_call.1} parent=1 // pred_region
      _
    $region9: #{tpu_custom_call.1} parent=1 // pred_fallthru
      _
    // Predicated region
    $region10: #{tpu_custom_call.1} parent=1 // pred_check
      _
    $region11: #{tpu_custom_call.1} parent=1 // pred_check_branch
      %24 = sbr.rel (0) target = $region13
    $region12: #{tpu_custom_call.1} parent=1 // pred_region
      %25 = dma.done [#allocation3], 256
    $region13: #{tpu_custom_call.1} parent=1 // pred_fallthru
      _
    %v26 = vld [vmem:[#allocation2] sm:$0xff]
    %v27 = vld [vmem:[#allocation2 + $0x8] sm:$0xff]
    %v28 = vld [vmem:[%s1] sm:$0x1]
    %v29 = vld [vmem:[%s1 + $0x1] sm:$0x1]
    %v30 = vlaneseq
    %v31 = vshrl.u32 %v30, 7
    %v32 = vsub.s32 0, %v31
    %v33 = vrot.slane %v28, %v32
    %v34 = vsub.f32 %v26, %v33
    %v35 = vsub.f32 %v27, %v33
    %v36 = vlaneseq
    %v37 = vshrl.u32 %v36, 7
    %v38 = vsub.s32 0, %v37
    %v39 = vrot.slane %v29, %v38
    %v40 = vmul.f32 %v34, %v39
    %v41 = vmul.f32 %v35, %v39
    %42 = vst [vmem:[#allocation5] sm:$0xff] %v40
    %43 = vst [vmem:[#allocation5 + $0x8] sm:$0xff] %v41
    // Predicated region
    $region14: #{tpu_custom_call.1} parent=1 // pred_check
      _
    $region15: #{tpu_custom_call.1} parent=1 // pred_check_branch
      %45 = sbr.rel (0) target = $region17
    $region16: #{tpu_custom_call.1} parent=1 // pred_region
      %s47 = ssub.s32 256, 256
      %48 = vsyncadd [#allocation4], %s47
      %s49 = sshll.u32 [#allocation5], 4
      %s50 = int_to_ptr.vmem [resolvable:$true] %s49
      %55 = dma.vmem_to_hbm [thread:$0]  %s50, 256, %s2, [#allocation4], 128, 128, 8
    $region17: #{tpu_custom_call.1} parent=1 // pred_fallthru
      _
    // Predicated region
    $region18: #{tpu_custom_call.1} parent=1 // pred_check
      _
    $region19: #{tpu_custom_call.1} parent=1 // pred_check_branch
      %57 = sbr.rel (0) target = $region21
    $region20: #{tpu_custom_call.1} parent=1 // pred_region
      %58 = dma.done [#allocation4], 256
    $region21: #{tpu_custom_call.1} parent=1 // pred_fallthru
      _
    %59 = vsyncpa [#allocation3], 1
    %60 = vsyncpa [#allocation4], 1

</llo_original>
